<compile_context>
chip_gen: v5e
topology: v5e:2x2
jax: 0.10.0
libtpu: 0.0.40
codegen_flags: <defaults>
</compile_context>

<pallas_src>
import functools

import jax
import jax.numpy as jnp
from jax.experimental import pallas as pl
from jax.experimental.pallas import tpu as pltpu


def _round_up(x, m):
    return ((x + m - 1) // m) * m


def _soft_dice_partials_kernel(logits_ref, tgt_ref, part_ref, *,
                               n_valid, powerize, has_tail):
    """Per-tile per-class partial sums: [sum p, sum p*onehot, sum p^2, count]."""
    i = pl.program_id(0)
    C, tile_n = logits_ref.shape

    logits = logits_ref[...].astype(jnp.float32)          # (C, tile_n)
    tgt = tgt_ref[...]                                     # (1, tile_n) int32

    if has_tail:
        # Columns past the true N (partial trailing block) hold uninitialized
        # VMEM; zero them BEFORE max/exp so NaN/Inf garbage cannot survive
        # (0 * NaN = NaN would defeat a post-mask).
        col = jax.lax.broadcasted_iota(jnp.int32, (1, tile_n), 1) + i * tile_n
        valid = col < n_valid                              # (1, tile_n) bool
        valid_f = valid.astype(jnp.float32)
        logits = jnp.where(valid, logits, 0.0)

    # Softmax over classes (classes on sublanes, points on lanes -> all 128
    # lanes carry real data even for small C).
    m = jnp.max(logits, axis=0, keepdims=True)             # (1, tile_n)
    e = jnp.exp(logits - m)                                # (C, tile_n)
    denom = jnp.sum(e, axis=0, keepdims=True)              # (1, tile_n)
    # approx reciprocal runs on the EUP slot; ~1e-4-level relative error is a
    # deliberate, documented deviation from the exact torch divide.
    p = e * pl.reciprocal(denom, approx=True)              # (C, tile_n)

    class_ids = jax.lax.broadcasted_iota(jnp.int32, (C, tile_n), 0)
    onehot = (class_ids == tgt).astype(jnp.float32)        # (C, tile_n)

    if has_tail:
        p = p * valid_f            # padded columns contribute exactly 0
        onehot = onehot * valid_f  # padded targets are garbage -> mask counts

    # One lane-axis reduce per quantity per tile (VPU adds across vregs plus a
    # single XLU reduce); no persistent wide accumulators, no RMW VMEM traffic.
    sp = jnp.sum(p, axis=1, keepdims=True)                 # (C, 1)  sum p
    spo = jnp.sum(p * onehot, axis=1, keepdims=True)       # (C, 1)  sum p*onehot
    cnt = jnp.sum(onehot, axis=1, keepdims=True)           # (C, 1)  class counts
    if powerize:
        spp = jnp.sum(p * p, axis=1, keepdims=True)        # (C, 1)  sum p^2
    else:
        spp = sp

    part_ref[...] = jnp.concatenate([sp, spo, spp, cnt], axis=1)[None]  # (1,C,4)


def soft_dice_loss_class_major(logits_cn, target, *, eps=0.05, powerize=True,
                               use_tmask=True, neg_range=False,
                               block_bytes=1 << 20):
    """logits_cn: (C, N) logits (class-major, zero-copy path); target: (N,) ints.

    Returns the scalar SoftDICE loss with the PyTorch module's defaults.
    TODO(synk): ignore_label filtering and the is_kitti soft-label variant are
    data-dependent compaction/remap; not implemented (module defaults
    ignore_label=None, is_kitti=False are reproduced).
    """
    C, N = logits_cn.shape
    assert C >= 2, "SoftDICE needs at least 2 classes (eps/(C-1) undefined)"
    assert target.shape == (N,)

    itemsize = jnp.dtype(logits_cn.dtype).itemsize
    # Lane tile sized from a VMEM budget for the (double-buffered) logits
    # block; multiple of 128; no larger than needed to cover N.
    tile_n = max(128, (block_bytes // (C * itemsize)) // 128 * 128)
    tile_n = min(tile_n, _round_up(N, 128))
    num_tiles = -(-N // tile_n)
    has_tail = (N % tile_n) != 0

    tgt2d = target.astype(jnp.int32).reshape(1, N)        # free reshape, no pad

    kernel = functools.partial(_soft_dice_partials_kernel,
                               n_valid=N, powerize=powerize, has_tail=has_tail)

    partials = pl.pallas_call(
        kernel,
        out_shape=jax.ShapeDtypeStruct((num_tiles, C, 4), jnp.float32),
        grid_spec=pltpu.PrefetchScalarGridSpec(
            num_scalar_prefetch=0,
            grid=(num_tiles,),
            in_specs=[
                pl.BlockSpec((C, tile_n), lambda i: (0, i)),
                pl.BlockSpec((1, tile_n), lambda i: (0, i)),
            ],
            out_specs=pl.BlockSpec((1, C, 4), lambda i: (i, 0, 0)),
        ),
        compiler_params=pltpu.CompilerParams(
            # Independent per-tile partial sums -> megacore can split the grid
            # across both TensorCores on v7x.
            dimension_semantics=("parallel",),
            vmem_limit_bytes=32 * 1024 * 1024,
        ),
    )(logits_cn, tgt2d)

    # Tiny JAX epilogue over num_tiles * C * 4 elements.
    tot = jnp.sum(partials, axis=0)                       # (C, 4)
    sp, spo, spp, cnt = tot[:, 0], tot[:, 1], tot[:, 2], tot[:, 3]

    max_val = 1.0 - eps
    min_val = eps / (C - 1)
    # target_soft = min_val + (max_val - min_val) * onehot, hence:
    inter = min_val * sp + (max_val - min_val) * spo
    ts = min_val * jnp.float32(N) + (max_val - min_val) * cnt
    union = (spp if powerize else sp) + ts + 1e-12
    if use_tmask:
        tmask = (cnt > 0.0).astype(jnp.float32)
    else:
        tmask = jnp.ones_like(cnt)
    iou_class = tmask * 2.0 * inter / union
    iou = jnp.sum(iou_class) / (jnp.sum(tmask) + 1e-12)
    return -iou if neg_range else 1.0 - iou


def soft_dice_loss(output, target, *, eps=0.05, powerize=True, use_tmask=True,
                   neg_range=False, block_bytes=1 << 20):
    """Drop-in torch layout: output (N, C) logits, target (N,) labels.

    NOTE: the (N, C) -> (C, N) transpose below is the one remaining host-side
    copy (~2x the kernel's own HBM traffic). Callers that can produce
    class-major logits should call soft_dice_loss_class_major directly.
    """
    logits_cn = jnp.transpose(output)
    return soft_dice_loss_class_major(
        logits_cn, target, eps=eps, powerize=powerize, use_tmask=use_tmask,
        neg_range=neg_range, block_bytes=block_bytes)


def _reference(output, target, eps=0.05, powerize=True, use_tmask=True,
               neg_range=False):
    # Pure-JAX reference mirroring the PyTorch forward (defaults).
    N, C = output.shape
    onehot = jax.nn.one_hot(target, C, dtype=jnp.float32)
    t_soft = jnp.where(onehot > 0.5, 1.0 - eps, eps / (C - 1))
    p = jax.nn.softmax(output.astype(jnp.float32), axis=-1)
    inter = jnp.sum(p * t_soft, axis=0)
    if powerize:
        union = jnp.sum(p * p, axis=0) + jnp.sum(t_soft, axis=0) + 1e-12
    else:
        union = jnp.sum(p, axis=0) + jnp.sum(t_soft, axis=0) + 1e-12
    if use_tmask:
        tmask = (jnp.sum(onehot, axis=0) > 0).astype(jnp.float32)
    else:
        tmask = jnp.ones((C,), jnp.float32)
    iou = jnp.sum(tmask * 2 * inter / union) / (jnp.sum(tmask) + 1e-12)
    return -iou if neg_range else 1.0 - iou


if __name__ == "__main__":
    key = jax.random.PRNGKey(0)
    k1, k2 = jax.random.split(key)
    N, C = 300, 8                       # small: 300 points (non-128-multiple), 8 classes
    logits = jax.random.normal(k1, (N, C), dtype=jnp.float32)
    labels = jax.random.randint(k2, (N,), 0, C, dtype=jnp.int32)

    ref = _reference(logits, labels)

    # Default path: single VMEM-budget-sized tile, partial block + tail mask.
    loss = jax.block_until_ready(soft_dice_loss(logits, labels))
    assert jnp.allclose(loss, ref, atol=2e-3, rtol=2e-3), (loss, ref)

    # Forced multi-tile path: 3 grid steps, partial trailing block, epilogue sum.
    loss_mt = jax.block_until_ready(
        soft_dice_loss(logits, labels, block_bytes=128 * C * 4))
    assert jnp.allclose(loss_mt, ref, atol=2e-3, rtol=2e-3), (loss_mt, ref)

    # bf16 logits stay bf16 through HBM/DMA; f32 math in-kernel.
    logits_bf = logits.astype(jnp.bfloat16)
    ref_bf = _reference(logits_bf.astype(jnp.float32), labels)
    loss_bf = jax.block_until_ready(soft_dice_loss(logits_bf, labels))
    assert jnp.allclose(loss_bf, ref_bf, atol=2e-3, rtol=2e-3), (loss_bf, ref_bf)

    print("KERNEL_OK")
</pallas_src>

<mosaic_0001>
module attributes {stable_mosaic.version = 11 : i64} {
  func.func @_soft_dice_partials_kernel(%arg0: i32, %arg1: memref<8x384xf32, #tpu.memory_space<vmem>>, %arg2: memref<1x384xi32, #tpu.memory_space<vmem>>, %arg3: memref<1x8x4xf32, #tpu.memory_space<vmem>>) attributes {dimension_semantics = [#tpu.dimension_semantics<parallel>], iteration_bounds = array<i64: 1>, scalar_prefetch = 0 : i64, scratch_operands = 0 : i64, tpu.core_type = #tpu.core_type<tc>, window_params = [{transform_indices = @transform_0, window_bounds = array<i64: 8, 384>}, {transform_indices = @transform_1, window_bounds = array<i64: 1, 384>}, {transform_indices = @transform_2, window_bounds = array<i64: 1, 8, 4>}]} {
    %c0 = arith.constant 0 : index
    %c0_0 = arith.constant 0 : index
    %0 = vector.load %arg1[%c0, %c0_0] : memref<8x384xf32, #tpu.memory_space<vmem>>, vector<8x384xf32>
    %c0_1 = arith.constant 0 : index
    %c0_2 = arith.constant 0 : index
    %1 = vector.load %arg2[%c0_1, %c0_2] : memref<1x384xi32, #tpu.memory_space<vmem>>, vector<1x384xi32>
    %2 = tpu.iota {dimensions = array<i32: 1>} : vector<1x384xi32>
    %c384_i32 = arith.constant 384 : i32
    %3 = arith.muli %arg0, %c384_i32 : i32
    %4 = vector.broadcast %3 : i32 to vector<1x384xi32>
    %5 = arith.addi %2, %4 : vector<1x384xi32>
    %c300_i32 = arith.constant 300 : i32
    %6 = vector.broadcast %c300_i32 : i32 to vector<1x384xi32>
    %7 = arith.cmpi slt, %5, %6 : vector<1x384xi32>
    %8 = arith.extui %7 : vector<1x384xi1> to vector<1x384xi32>
    %9 = arith.sitofp %8 : vector<1x384xi32> to vector<1x384xf32>
    %cst = arith.constant 0.000000e+00 : f32
    %10 = vector.shape_cast %7 : vector<1x384xi1> to vector<1x384xi1>
    %11 = vector.broadcast %10 : vector<1x384xi1> to vector<8x384xi1>
    %12 = vector.broadcast %cst : f32 to vector<8x384xf32>
    %13 = arith.select %11, %0, %12 : vector<8x384xi1>, vector<8x384xf32>
    %cst_3 = arith.constant dense<0xFF800000> : vector<384xf32>
    %14 = vector.multi_reduction <maximumf>, %13, %cst_3 [0] : vector<8x384xf32> to vector<384xf32>
    %15 = vector.shape_cast %14 : vector<384xf32> to vector<1x384xf32>
    %16 = vector.broadcast %15 : vector<1x384xf32> to vector<8x384xf32>
    %17 = arith.subf %13, %16 : vector<8x384xf32>
    %18 = math.exp %17 : vector<8x384xf32>
    %cst_4 = arith.constant dense<0.000000e+00> : vector<384xf32>
    %19 = vector.multi_reduction <add>, %18, %cst_4 [0] : vector<8x384xf32> to vector<384xf32>
    %20 = vector.shape_cast %19 : vector<384xf32> to vector<1x384xf32>
    %21 = tpu.reciprocal %20 {approx = true} : vector<1x384xf32> -> vector<1x384xf32>
    %22 = vector.broadcast %21 : vector<1x384xf32> to vector<8x384xf32>
    %23 = arith.mulf %18, %22 : vector<8x384xf32>
    %24 = tpu.iota {dimensions = array<i32: 0>} : vector<8x384xi32>
    %25 = vector.broadcast %1 : vector<1x384xi32> to vector<8x384xi32>
    %26 = arith.cmpi eq, %24, %25 : vector<8x384xi32>
    %27 = arith.extui %26 : vector<8x384xi1> to vector<8x384xi32>
    %28 = arith.sitofp %27 : vector<8x384xi32> to vector<8x384xf32>
    %29 = vector.broadcast %9 : vector<1x384xf32> to vector<8x384xf32>
    %30 = arith.mulf %23, %29 : vector<8x384xf32>
    %31 = vector.broadcast %9 : vector<1x384xf32> to vector<8x384xf32>
    %32 = arith.mulf %28, %31 : vector<8x384xf32>
    %cst_5 = arith.constant dense<0.000000e+00> : vector<8xf32>
    %33 = vector.multi_reduction <add>, %30, %cst_5 [1] : vector<8x384xf32> to vector<8xf32>
    %34 = vector.shape_cast %33 : vector<8xf32> to vector<8x1xf32>
    %35 = arith.mulf %30, %32 : vector<8x384xf32>
    %cst_6 = arith.constant dense<0.000000e+00> : vector<8xf32>
    %36 = vector.multi_reduction <add>, %35, %cst_6 [1] : vector<8x384xf32> to vector<8xf32>
    %37 = vector.shape_cast %36 : vector<8xf32> to vector<8x1xf32>
    %cst_7 = arith.constant dense<0.000000e+00> : vector<8xf32>
    %38 = vector.multi_reduction <add>, %32, %cst_7 [1] : vector<8x384xf32> to vector<8xf32>
    %39 = vector.shape_cast %38 : vector<8xf32> to vector<8x1xf32>
    %40 = arith.mulf %30, %30 : vector<8x384xf32>
    %cst_8 = arith.constant dense<0.000000e+00> : vector<8xf32>
    %41 = vector.multi_reduction <add>, %40, %cst_8 [1] : vector<8x384xf32> to vector<8xf32>
    %42 = vector.shape_cast %41 : vector<8xf32> to vector<8x1xf32>
    %43 = tpu.concatenate %34, %37, %42, %39 in 1 : vector<8x1xf32>, vector<8x1xf32>, vector<8x1xf32>, vector<8x1xf32> -> vector<8x4xf32>
    %44 = vector.shape_cast %43 : vector<8x4xf32> to vector<1x8x4xf32>
    %c0_9 = arith.constant 0 : index
    %c0_10 = arith.constant 0 : index
    %c0_11 = arith.constant 0 : index
    %45 = vector.load %arg3[%c0_9, %c0_10, %c0_11] : memref<1x8x4xf32, #tpu.memory_space<vmem>>, vector<1x8x4xf32>
    tpu.vector_store %arg3[%c0_9, %c0_10, %c0_11], %44 {strides = array<i32>} : memref<1x8x4xf32, #tpu.memory_space<vmem>>, vector<1x8x4xf32>,
    return
  }
  func.func @transform_0(%arg0: i32) -> (i32, i32) {
    %c0_i32 = arith.constant 0 : i32
    %c0_i32_0 = arith.constant 0 : i32
    return %c0_i32, %arg0 : i32, i32
  }
  func.func @transform_1(%arg0: i32) -> (i32, i32) {
    %c0_i32 = arith.constant 0 : i32
    %c0_i32_0 = arith.constant 0 : i32
    return %c0_i32, %arg0 : i32, i32
  }
  func.func @transform_2(%arg0: i32) -> (i32, i32, i32) {
    %c0_i32 = arith.constant 0 : i32
    %c0_i32_0 = arith.constant 0 : i32
    %c0_i32_1 = arith.constant 0 : i32
    return %arg0, %c0_i32, %c0_i32_0 : i32, i32, i32
  }
}

</mosaic_0001>

<llo_original>
// kernel: tpu_custom_call.1
$region0: #{tpu_custom_call.1}
  #allocation0 [shape = 'u32[]', space=smem, size = 0x4, offset = 0x4, fixed_abs, tag = 'smem constant byte address 0x4 - core index']
  #allocation1 [shape = 'u32[72,128]{1,0:T(1,128)}', space=vmem, size = 0x9000, scoped, tag = 'internal scratch']
  %s0 = inlined_call_operand.hbm [shape: f32[8,300], index: 0, kind: input, shape index: {}]
  %s1 = inlined_call_operand.hbm [shape: s32[1,300], index: 1, kind: input, shape index: {}]
  %s2 = inlined_call_operand.vmem [shape: f32[1,8,4], index: 2, kind: output, shape index: {}]
  %s3 = sld [smem:[#allocation0]]
  $region26: #{tpu_custom_call.1} parent=0
    _
  %s5 = ssub.s32 1, %s3
  %s6 = scalar_select 0, %s5, %s3
  $region1: #{tpu_custom_call.1} parent=0
    #allocation2 [shape = 'u8[12288]{0}', space=vmem, size = 0x3000, scoped, tag = 'input window, operand 0, single buffered']
    #allocation3 [shape = 's32[1]{0}', space=sflag, size = 0x4, scoped, tag = 'scoped memory for tpu_custom_call.1']
    #allocation4 [shape = 'u8[1536]{0}', space=vmem, size = 0x800, scoped, tag = 'input window, operand 1, single buffered']
    #allocation5 [shape = 's32[1]{0}', space=sflag, size = 0x4, scoped, tag = 'scoped memory for tpu_custom_call.1']
    %7 = vsyncpa [#allocation3], 0
    %8 = vsyncpa [#allocation5], 0
    // Predicated region
    $region2: #{tpu_custom_call.1} parent=1 // pred_check
      _
    $region3: #{tpu_custom_call.1} parent=1 // pred_check_branch
      %10 = sbr.rel (0) target = $region5
    $region4: #{tpu_custom_call.1} parent=1 // pred_region
      %12 = vsyncadd [#allocation3], 0
      %s14 = sshll.u32 %s0, 4
      %s15 = int_to_ptr.hbm [resolvable:$true] %s14
      %s16 = sshll.u32 [#allocation2], 4
      %s17 = int_to_ptr.vmem [resolvable:$true] %s16
      %19 = dma.hbm_to_vmem [thread:$0]  %s15, 384, %s17, [#allocation3]
    $region5: #{tpu_custom_call.1} parent=1 // pred_fallthru
      _
    // Predicated region
    $region6: #{tpu_custom_call.1} parent=1 // pred_check
      _
    $region7: #{tpu_custom_call.1} parent=1 // pred_check_branch
      %21 = sbr.rel (0) target = $region9
    $region8: #{tpu_custom_call.1} parent=1 // pred_region
      %23 = vsyncadd [#allocation5], 0
      %s25 = sshll.u32 %s1, 4
      %s26 = int_to_ptr.hbm [resolvable:$true] %s25
      %s27 = sshll.u32 [#allocation4], 4
      %s28 = int_to_ptr.vmem [resolvable:$true] %s27
      %30 = dma.hbm_to_vmem [thread:$0]  %s26, 48, %s28, [#allocation5]
    $region9: #{tpu_custom_call.1} parent=1 // pred_fallthru
      _
    // Predicated region
    $region10: #{tpu_custom_call.1} parent=1 // pred_check
      _
    $region11: #{tpu_custom_call.1} parent=1 // pred_check_branch
      %32 = sbr.rel (0) target = $region13
    $region12: #{tpu_custom_call.1} parent=1 // pred_region
      %34 = dma.done [#allocation3], 384
    $region13: #{tpu_custom_call.1} parent=1 // pred_fallthru
      _
    // Predicated region
    $region14: #{tpu_custom_call.1} parent=1 // pred_check
      _
    $region15: #{tpu_custom_call.1} parent=1 // pred_check_branch
      %36 = sbr.rel (0) target = $region17
    $region16: #{tpu_custom_call.1} parent=1 // pred_region
      %38 = dma.done [#allocation5], 48
    $region17: #{tpu_custom_call.1} parent=1 // pred_fallthru
      _
    %v39 = vld [vmem:[#allocation2] sm:$0xff]
    %v40 = vld [vmem:[#allocation2 + $0x8] sm:$0xff]
    %v41 = vld [vmem:[#allocation2 + $0x10] sm:$0xff]
    %v42 = vld [vmem:[#allocation4] sm:$0x7]
    %v43 = vlaneseq
    %v44 = vand.u32 %v43, 127
    %v45 = vadd.s32 %v44, 128
    %v46 = vadd.s32 %v44, 256
    %s47 = smul.u32 0, 384
    %v48 = vstv %s47
    %v49 = vadd.s32 %v44, %v48
    %v50 = vadd.s32 %v45, %v48
    %v51 = vadd.s32 %v46, %v48
    %vm52 = vcmp.lt.s32.totalorder %v49, 300
    %vm53 = vcmp.lt.s32.totalorder %v50, 300
    %vm54 = vcmp.lt.s32.totalorder %v51, 300
    %v55 = vsel %vm52, 1, 0
    %v56 = vsel %vm53, 1, 0
    %v57 = vsel %vm54, 1, 0
    %v58 = vcvt.s32.f32 %v55
    %v59 = vcvt.s32.f32 %v56
    %v60 = vcvt.s32.f32 %v57
    %vm61 = vcmp.eq.s32.totalorder %v55, 1
    %vm62 = vcmp.eq.s32.totalorder %v56, 1
    %vm63 = vcmp.eq.s32.totalorder %v57, 1
    %v64 = vsel %vm61, %v39, 0.0
    %v65 = vsel %vm62, %v40, 0.0
    %v66 = vsel %vm63, %v41, 0.0
    %v67 = vrot.slane %v64, 4
    %v68 = vmax.f32 %v64, %v67
    %v69 = vrot.slane %v68, 2
    %v70 = vmax.f32 %v68, %v69
    %v71 = vrot.slane %v70, 1
    %v72 = vmax.f32 %v70, %v71
    %v73 = vrot.slane %v65, 4
    %v74 = vmax.f32 %v65, %v73
    %v75 = vrot.slane %v74, 2
    %v76 = vmax.f32 %v74, %v75
    %v77 = vrot.slane %v76, 1
    %v78 = vmax.f32 %v76, %v77
    %v79 = vrot.slane %v66, 4
    %v80 = vmax.f32 %v66, %v79
    %v81 = vrot.slane %v80, 2
    %v82 = vmax.f32 %v80, %v81
    %v83 = vrot.slane %v82, 1
    %v84 = vmax.f32 %v82, %v83
    %v85 = vsub.f32 %v64, %v72
    %v86 = vsub.f32 %v65, %v78
    %v87 = vsub.f32 %v66, %v84
    %v88 = vmul.f32 %v85, 1.442695
    %v89 = vpow.pop %v88
    %v90 = vmul.f32 %v86, 1.442695
    %v91 = vpow.pop %v90
    %v92 = vmul.f32 %v87, 1.442695
    %v93 = vpow.pop %v92
    %v94 = vrot.slane %v89, 4
    %v95 = vadd.f32 %v89, %v94
    %v96 = vrot.slane %v95, 2
    %v97 = vadd.f32 %v95, %v96
    %v98 = vrot.slane %v97, 1
    %v99 = vadd.f32 %v97, %v98
    %v100 = vrot.slane %v91, 4
    %v101 = vadd.f32 %v91, %v100
    %v102 = vrot.slane %v101, 2
    %v103 = vadd.f32 %v101, %v102
    %v104 = vrot.slane %v103, 1
    %v105 = vadd.f32 %v103, %v104
    %v106 = vrot.slane %v93, 4
    %v107 = vadd.f32 %v93, %v106
    %v108 = vrot.slane %v107, 2
    %v109 = vadd.f32 %v107, %v108
    %v110 = vrot.slane %v109, 1
    %v111 = vadd.f32 %v109, %v110
    %v112 = vrcp.pop %v99
    %v113 = vrcp.pop %v105
    %v114 = vrcp.pop %v111
    %v115 = vmul.f32 %v89, %v112
    %v116 = vmul.f32 %v91, %v113
    %v117 = vmul.f32 %v93, %v114
    %v118 = vlaneseq
    %v119 = vshrl.u32 %v118, 7
    %v120 = vperm.slane %v42, 0
    %v121 = vperm.slane %v42, 1
    %v122 = vperm.slane %v42, 2
    %vm123 = vcmp.eq.s32.totalorder %v119, %v120
    %vm124 = vcmp.eq.s32.totalorder %v119, %v121
    %vm125 = vcmp.eq.s32.totalorder %v119, %v122
    %v126 = vsel %vm123, 1, 0
    %v127 = vsel %vm124, 1, 0
    %v128 = vsel %vm125, 1, 0
    %v129 = vcvt.s32.f32 %v126
    %v130 = vcvt.s32.f32 %v127
    %v131 = vcvt.s32.f32 %v128
    %v132 = vmul.f32 %v115, %v58
    %v133 = vmul.f32 %v116, %v59
    %v134 = vmul.f32 %v117, %v60
    %v135 = vmul.f32 %v129, %v58
    %v136 = vmul.f32 %v130, %v59
    %v137 = vmul.f32 %v131, %v60
    %v138 = vadd.f32 %v132, %v133
    %v139 = vadd.f32 %v138, %v134
    %140 = vadd.xlane.f32.xlu0 %v139
    %v141 = vpop.xlane.xlu0 %140
    %v142 = vmul.f32 %v132, %v135
    %v143 = vmul.f32 %v133, %v136
    %v144 = vmul.f32 %v134, %v137
    %v145 = vadd.f32 %v142, %v143
    %v146 = vadd.f32 %v145, %v144
    %147 = vadd.xlane.f32.xlu0 %v146
    %v148 = vpop.xlane.xlu0 %147
    %v149 = vadd.f32 %v135, %v136
    %v150 = vadd.f32 %v149, %v137
    %151 = vadd.xlane.f32.xlu0 %v150
    %v152 = vpop.xlane.xlu0 %151
    %v153 = vmul.f32 %v132, %v132
    %v154 = vmul.f32 %v133, %v133
    %v155 = vmul.f32 %v134, %v134
    %v156 = vadd.f32 %v153, %v154
    %v157 = vadd.f32 %v156, %v155
    %158 = vadd.xlane.f32.xlu0 %v157
    %v159 = vpop.xlane.xlu0 %158
    %vm160 = vcmask 7168
    %v161 = vsel %vm160, %v141, %v148
    %vm162 = vcmask 15360
    %v163 = vsel %vm162, %v161, %v159
    %vm164 = vcmask 23552
    %v165 = vsel %vm164, %v163, %v152
    %vm166 = vcmask 31744
    %167 = vst.msk [vmem:[%s2] sm:$0xff] %vm166, %v165
    // Predicated region
    $region18: #{tpu_custom_call.1} parent=1 // pred_check
      _
    $region19: #{tpu_custom_call.1} parent=1 // pred_check_branch
      %169 = sbr.rel (0) target = $region21
    $region20: #{tpu_custom_call.1} parent=1 // pred_region
      _
    $region21: #{tpu_custom_call.1} parent=1 // pred_fallthru
      _
    // Predicated region
    $region22: #{tpu_custom_call.1} parent=1 // pred_check
      _
    $region23: #{tpu_custom_call.1} parent=1 // pred_check_branch
      %171 = sbr.rel (0) target = $region25
    $region24: #{tpu_custom_call.1} parent=1 // pred_region
      _
    $region25: #{tpu_custom_call.1} parent=1 // pred_fallthru
      _
    %172 = vsyncpa [#allocation3], 1
    %173 = vsyncpa [#allocation5], 1

</llo_original>
